<compile_context>
chip_gen: v6e
topology: v6e:2x2x1
jax: 0.10.0
libtpu: 0.0.40
codegen_flags: <defaults>
</compile_context>

<pallas_src>
import jax
import jax.numpy as jnp
from jax.experimental import pallas as pl
from jax.experimental.pallas import tpu as pltpu

EPS = 1e-5


def add_norm_kernel(x_ref, y_ref, gb_ref, o_ref):
    # x_ref, y_ref, o_ref: (rows_tile, D)   -- rows on sublanes, features on lanes
    # gb_ref: (2, D) float32                -- row 0 = gamma, row 1 = beta
    z = x_ref[...].astype(jnp.float32) + y_ref[...].astype(jnp.float32)
    mean = jnp.mean(z, axis=-1, keepdims=True)          # XLU lane reduce
    zc = z - mean
    var = jnp.mean(zc * zc, axis=-1, keepdims=True)      # centered (no cancellation)
    inv = jax.lax.rsqrt(var + EPS)                        # EUP slot
    gamma = gb_ref[0:1, :]
    beta = gb_ref[1:2, :]
    o_ref[...] = (zc * inv * gamma + beta).astype(o_ref.dtype)


def add_norm(X, Y, gamma, beta, *, rows_tile=1024):
    """LayerNorm(dropout(Y) + X) over the last axis (dropout = identity)."""
    D = X.shape[-1]
    rows = X.size // D
    x2 = X.reshape(rows, D)                               # free: row-major view
    y2 = Y.reshape(rows, D)
    gb = jnp.stack([gamma, beta]).astype(jnp.float32)     # (2, D), params kept f32

    if rows <= rows_tile:
        # Whole problem in VMEM as one block: no grid, no pipelining overhead.
        out2 = pl.pallas_call(
            add_norm_kernel,
            out_shape=jax.ShapeDtypeStruct((rows, D), X.dtype),
            in_specs=[
                pl.BlockSpec(memory_space=pltpu.MemorySpace.VMEM),
                pl.BlockSpec(memory_space=pltpu.MemorySpace.VMEM),
                pl.BlockSpec(memory_space=pltpu.MemorySpace.VMEM),
            ],
            out_specs=pl.BlockSpec(memory_space=pltpu.MemorySpace.VMEM),
        )(x2, y2, gb)
    else:
        # Row-tiled, per-row op => no cross-step carry; "parallel" lets v7x
        # shard the grid across its 2 TensorCores.
        grid = (pl.cdiv(rows, rows_tile),)
        out2 = pl.pallas_call(
            add_norm_kernel,
            out_shape=jax.ShapeDtypeStruct((rows, D), X.dtype),
            grid=grid,
            in_specs=[
                pl.BlockSpec((rows_tile, D), lambda i: (i, 0)),
                pl.BlockSpec((rows_tile, D), lambda i: (i, 0)),
                pl.BlockSpec((2, D), lambda i: (0, 0)),
            ],
            out_specs=pl.BlockSpec((rows_tile, D), lambda i: (i, 0)),
            compiler_params=pltpu.CompilerParams(
                dimension_semantics=("parallel",)),
        )(x2, y2, gb)

    return out2.reshape(X.shape)


def add_norm_ref(X, Y, gamma, beta):
    z = X + Y
    mean = jnp.mean(z, axis=-1, keepdims=True)
    var = jnp.mean((z - mean) ** 2, axis=-1, keepdims=True)
    return (z - mean) * jax.lax.rsqrt(var + EPS) * gamma + beta


if __name__ == "__main__":
    B, S, D = 2, 100, 24  # matches X = torch.ones((2, 100, 24)), normalized_shape = 24

    key = jax.random.PRNGKey(0)
    kx, ky = jax.random.split(key)
    X = jax.random.normal(kx, (B, S, D), dtype=jnp.float32)
    Y = jax.random.normal(ky, (B, S, D), dtype=jnp.float32)

    # LayerNorm params, PyTorch default init
    gamma = jnp.ones((D,), dtype=jnp.float32)
    beta = jnp.zeros((D,), dtype=jnp.float32)

    ref = add_norm_ref(X, Y, gamma, beta)

    # 1) Single-block path (the shape from the spec).
    out = jax.block_until_ready(add_norm(X, Y, gamma, beta))
    assert out.shape == (B, S, D)
    assert jnp.allclose(out, ref, atol=1e-4, rtol=1e-4), "mismatch (single-block path)"

    # 2) Row-tiled grid path (same data, small tile to exercise the grid +
    #    ragged-edge masking used at real scale).
    out_t = jax.block_until_ready(add_norm(X, Y, gamma, beta, rows_tile=64))
    assert jnp.allclose(out_t, ref, atol=1e-4, rtol=1e-4), "mismatch (tiled path)"

    print("KERNEL_OK")
</pallas_src>

<mosaic_0001>
module attributes {stable_mosaic.version = 11 : i64} {
  func.func @add_norm_kernel(%arg0: memref<200x24xf32, #tpu.memory_space<vmem>>, %arg1: memref<200x24xf32, #tpu.memory_space<vmem>>, %arg2: memref<2x24xf32, #tpu.memory_space<vmem>>, %arg3: memref<200x24xf32, #tpu.memory_space<vmem>>) attributes {dimension_semantics = [], scalar_prefetch = 0 : i64, scratch_operands = 0 : i64, tpu.core_type = #tpu.core_type<tc>} {
    %c0 = arith.constant 0 : index
    %c0_0 = arith.constant 0 : index
    %0 = vector.load %arg0[%c0, %c0_0] : memref<200x24xf32, #tpu.memory_space<vmem>>, vector<200x24xf32>
    %c0_1 = arith.constant 0 : index
    %c0_2 = arith.constant 0 : index
    %1 = vector.load %arg1[%c0_1, %c0_2] : memref<200x24xf32, #tpu.memory_space<vmem>>, vector<200x24xf32>
    %2 = arith.addf %0, %1 : vector<200x24xf32>
    %cst = arith.constant dense<0.000000e+00> : vector<200xf32>
    %3 = vector.multi_reduction <add>, %2, %cst [1] : vector<200x24xf32> to vector<200xf32>
    %4 = vector.shape_cast %3 : vector<200xf32> to vector<200x1xf32>
    %cst_3 = arith.constant 2.400000e+01 : f32
    %5 = vector.broadcast %cst_3 : f32 to vector<200x1xf32>
    %6 = arith.divf %4, %5 : vector<200x1xf32>
    %7 = vector.broadcast %6 : vector<200x1xf32> to vector<200x24xf32>
    %8 = arith.subf %2, %7 : vector<200x24xf32>
    %9 = arith.mulf %8, %8 : vector<200x24xf32>
    %cst_4 = arith.constant dense<0.000000e+00> : vector<200xf32>
    %10 = vector.multi_reduction <add>, %9, %cst_4 [1] : vector<200x24xf32> to vector<200xf32>
    %11 = vector.shape_cast %10 : vector<200xf32> to vector<200x1xf32>
    %cst_5 = arith.constant 2.400000e+01 : f32
    %12 = vector.broadcast %cst_5 : f32 to vector<200x1xf32>
    %13 = arith.divf %11, %12 : vector<200x1xf32>
    %cst_6 = arith.constant 9.99999974E-6 : f32
    %14 = vector.broadcast %cst_6 : f32 to vector<200x1xf32>
    %15 = arith.addf %13, %14 : vector<200x1xf32>
    %16 = math.rsqrt %15 : vector<200x1xf32>
    %c0_7 = arith.constant 0 : index
    %c0_8 = arith.constant 0 : index
    %17 = vector.load %arg2[%c0_7, %c0_8] : memref<2x24xf32, #tpu.memory_space<vmem>>, vector<1x24xf32>
    %c1 = arith.constant 1 : index
    %c0_9 = arith.constant 0 : index
    %18 = vector.load %arg2[%c1, %c0_9] : memref<2x24xf32, #tpu.memory_space<vmem>>, vector<1x24xf32>
    %19 = vector.broadcast %16 : vector<200x1xf32> to vector<200x24xf32>
    %20 = arith.mulf %8, %19 : vector<200x24xf32>
    %21 = vector.broadcast %17 : vector<1x24xf32> to vector<200x24xf32>
    %22 = arith.mulf %20, %21 : vector<200x24xf32>
    %23 = vector.broadcast %18 : vector<1x24xf32> to vector<200x24xf32>
    %24 = arith.addf %22, %23 : vector<200x24xf32>
    %c0_10 = arith.constant 0 : index
    %c0_11 = arith.constant 0 : index
    %25 = vector.load %arg3[%c0_10, %c0_11] : memref<200x24xf32, #tpu.memory_space<vmem>>, vector<200x24xf32>
    tpu.vector_store %arg3[%c0_10, %c0_11], %24 {strides = array<i32>} : memref<200x24xf32, #tpu.memory_space<vmem>>, vector<200x24xf32>,
    return
  }
}

</mosaic_0001>

<llo_original>
// kernel: tpu_custom_call.1
$region0: #{tpu_custom_call.1}
  #allocation0 [shape = 'u32[]', space=smem, size = 0x4, offset = 0x4, fixed_abs, tag = 'smem constant byte address 0x4 - core index']
  #allocation1 [shape = 'u32[144,128]{1,0:T(1,128)}', space=vmem, size = 0x12000, scoped, tag = 'internal scratch']
  %s0 = inlined_call_operand.vmem [shape: f32[200,24], index: 0, kind: input, shape index: {}]
  %s1 = inlined_call_operand.vmem [shape: f32[200,24], index: 1, kind: input, shape index: {}]
  %s2 = inlined_call_operand.vmem [shape: f32[2,24], index: 2, kind: input, shape index: {}]
  %s3 = inlined_call_operand.vmem [shape: f32[200,24], index: 3, kind: output, shape index: {}]
  %s4 = sld [smem:[#allocation0]]
  $region22: #{tpu_custom_call.1} parent=0
    _
  %s6 = ssub.s32 1, %s4
  %s7 = scalar_select 0, %s6, %s4
  // Predicated region
  $region2: #{tpu_custom_call.1} parent=0 // pred_check
    _
  $region3: #{tpu_custom_call.1} parent=0 // pred_check_branch
    %9 = sbr.rel (0) target = $region5
  $region4: #{tpu_custom_call.1} parent=0 // pred_region
    _
  $region5: #{tpu_custom_call.1} parent=0 // pred_fallthru
    _
  // Predicated region
  $region6: #{tpu_custom_call.1} parent=0 // pred_check
    _
  $region7: #{tpu_custom_call.1} parent=0 // pred_check_branch
    %11 = sbr.rel (0) target = $region9
  $region8: #{tpu_custom_call.1} parent=0 // pred_region
    _
  $region9: #{tpu_custom_call.1} parent=0 // pred_fallthru
    _
  // Predicated region
  $region10: #{tpu_custom_call.1} parent=0 // pred_check
    _
  $region11: #{tpu_custom_call.1} parent=0 // pred_check_branch
    %13 = sbr.rel (0) target = $region13
  $region12: #{tpu_custom_call.1} parent=0 // pred_region
    _
  $region13: #{tpu_custom_call.1} parent=0 // pred_fallthru
    _
  %v14 = vld [vmem:[%s0] sm:$0xff]
  %v15 = vld [vmem:[%s0 + $0x8] sm:$0xff]
  %v16 = vld [vmem:[%s0 + $0x10] sm:$0xff]
  %v17 = vld [vmem:[%s0 + $0x18] sm:$0xff]
  %v18 = vld [vmem:[%s0 + $0x20] sm:$0xff]
  %v19 = vld [vmem:[%s0 + $0x28] sm:$0xff]
  %v20 = vld [vmem:[%s0 + $0x30] sm:$0xff]
  %v21 = vld [vmem:[%s0 + $0x38] sm:$0xff]
  %v22 = vld [vmem:[%s0 + $0x40] sm:$0xff]
  %v23 = vld [vmem:[%s0 + $0x48] sm:$0xff]
  %v24 = vld [vmem:[%s0 + $0x50] sm:$0xff]
  %v25 = vld [vmem:[%s0 + $0x58] sm:$0xff]
  %v26 = vld [vmem:[%s0 + $0x60] sm:$0xff]
  %v27 = vld [vmem:[%s0 + $0x68] sm:$0xff]
  %v28 = vld [vmem:[%s0 + $0x70] sm:$0xff]
  %v29 = vld [vmem:[%s0 + $0x78] sm:$0xff]
  %v30 = vld [vmem:[%s0 + $0x80] sm:$0xff]
  %v31 = vld [vmem:[%s0 + $0x88] sm:$0xff]
  %v32 = vld [vmem:[%s0 + $0x90] sm:$0xff]
  %v33 = vld [vmem:[%s0 + $0x98] sm:$0xff]
  %v34 = vld [vmem:[%s0 + $0xa0] sm:$0xff]
  %v35 = vld [vmem:[%s0 + $0xa8] sm:$0xff]
  %v36 = vld [vmem:[%s0 + $0xb0] sm:$0xff]
  %v37 = vld [vmem:[%s0 + $0xb8] sm:$0xff]
  %v38 = vld [vmem:[%s0 + $0xc0] sm:$0xff]
  %v39 = vld [vmem:[%s1] sm:$0xff]
  %v40 = vld [vmem:[%s1 + $0x8] sm:$0xff]
  %v41 = vld [vmem:[%s1 + $0x10] sm:$0xff]
  %v42 = vld [vmem:[%s1 + $0x18] sm:$0xff]
  %v43 = vld [vmem:[%s1 + $0x20] sm:$0xff]
  %v44 = vld [vmem:[%s1 + $0x28] sm:$0xff]
  %v45 = vld [vmem:[%s1 + $0x30] sm:$0xff]
  %v46 = vld [vmem:[%s1 + $0x38] sm:$0xff]
  %v47 = vld [vmem:[%s1 + $0x40] sm:$0xff]
  %v48 = vld [vmem:[%s1 + $0x48] sm:$0xff]
  %v49 = vld [vmem:[%s1 + $0x50] sm:$0xff]
  %v50 = vld [vmem:[%s1 + $0x58] sm:$0xff]
  %v51 = vld [vmem:[%s1 + $0x60] sm:$0xff]
  %v52 = vld [vmem:[%s1 + $0x68] sm:$0xff]
  %v53 = vld [vmem:[%s1 + $0x70] sm:$0xff]
  %v54 = vld [vmem:[%s1 + $0x78] sm:$0xff]
  %v55 = vld [vmem:[%s1 + $0x80] sm:$0xff]
  %v56 = vld [vmem:[%s1 + $0x88] sm:$0xff]
  %v57 = vld [vmem:[%s1 + $0x90] sm:$0xff]
  %v58 = vld [vmem:[%s1 + $0x98] sm:$0xff]
  %v59 = vld [vmem:[%s1 + $0xa0] sm:$0xff]
  %v60 = vld [vmem:[%s1 + $0xa8] sm:$0xff]
  %v61 = vld [vmem:[%s1 + $0xb0] sm:$0xff]
  %v62 = vld [vmem:[%s1 + $0xb8] sm:$0xff]
  %v63 = vld [vmem:[%s1 + $0xc0] sm:$0xff]
  %v64 = vadd.f32 %v14, %v39
  %v65 = vadd.f32 %v15, %v40
  %v66 = vadd.f32 %v16, %v41
  %v67 = vadd.f32 %v17, %v42
  %v68 = vadd.f32 %v18, %v43
  %v69 = vadd.f32 %v19, %v44
  %v70 = vadd.f32 %v20, %v45
  %v71 = vadd.f32 %v21, %v46
  %v72 = vadd.f32 %v22, %v47
  %v73 = vadd.f32 %v23, %v48
  %v74 = vadd.f32 %v24, %v49
  %v75 = vadd.f32 %v25, %v50
  %v76 = vadd.f32 %v26, %v51
  %v77 = vadd.f32 %v27, %v52
  %v78 = vadd.f32 %v28, %v53
  %v79 = vadd.f32 %v29, %v54
  %v80 = vadd.f32 %v30, %v55
  %v81 = vadd.f32 %v31, %v56
  %v82 = vadd.f32 %v32, %v57
  %v83 = vadd.f32 %v33, %v58
  %v84 = vadd.f32 %v34, %v59
  %v85 = vadd.f32 %v35, %v60
  %v86 = vadd.f32 %v36, %v61
  %v87 = vadd.f32 %v37, %v62
  %v88 = vadd.f32 %v38, %v63
  %vm89 = vcmask 195584
  %v90 = vsel %vm89, %v64, 0.0
  %91 = vadd.xlane.f32.xlu0 %v90
  %v92 = vpop.xlane.xlu0 %91
  %v93 = vsel %vm89, %v65, 0.0
  %94 = vadd.xlane.f32.xlu0 %v93
  %v95 = vpop.xlane.xlu0 %94
  %v96 = vsel %vm89, %v66, 0.0
  %97 = vadd.xlane.f32.xlu0 %v96
  %v98 = vpop.xlane.xlu0 %97
  %v99 = vsel %vm89, %v67, 0.0
  %100 = vadd.xlane.f32.xlu0 %v99
  %v101 = vpop.xlane.xlu0 %100
  %v102 = vsel %vm89, %v68, 0.0
  %103 = vadd.xlane.f32.xlu0 %v102
  %v104 = vpop.xlane.xlu0 %103
  %v105 = vsel %vm89, %v69, 0.0
  %106 = vadd.xlane.f32.xlu0 %v105
  %v107 = vpop.xlane.xlu0 %106
  %v108 = vsel %vm89, %v70, 0.0
  %109 = vadd.xlane.f32.xlu0 %v108
  %v110 = vpop.xlane.xlu0 %109
  %v111 = vsel %vm89, %v71, 0.0
  %112 = vadd.xlane.f32.xlu0 %v111
  %v113 = vpop.xlane.xlu0 %112
  %v114 = vsel %vm89, %v72, 0.0
  %115 = vadd.xlane.f32.xlu0 %v114
  %v116 = vpop.xlane.xlu0 %115
  %v117 = vsel %vm89, %v73, 0.0
  %118 = vadd.xlane.f32.xlu0 %v117
  %v119 = vpop.xlane.xlu0 %118
  %v120 = vsel %vm89, %v74, 0.0
  %121 = vadd.xlane.f32.xlu0 %v120
  %v122 = vpop.xlane.xlu0 %121
  %v123 = vsel %vm89, %v75, 0.0
  %124 = vadd.xlane.f32.xlu0 %v123
  %v125 = vpop.xlane.xlu0 %124
  %v126 = vsel %vm89, %v76, 0.0
  %127 = vadd.xlane.f32.xlu0 %v126
  %v128 = vpop.xlane.xlu0 %127
  %v129 = vsel %vm89, %v77, 0.0
  %130 = vadd.xlane.f32.xlu0 %v129
  %v131 = vpop.xlane.xlu0 %130
  %v132 = vsel %vm89, %v78, 0.0
  %133 = vadd.xlane.f32.xlu0 %v132
  %v134 = vpop.xlane.xlu0 %133
  %v135 = vsel %vm89, %v79, 0.0
  %136 = vadd.xlane.f32.xlu0 %v135
  %v137 = vpop.xlane.xlu0 %136
  %v138 = vsel %vm89, %v80, 0.0
  %139 = vadd.xlane.f32.xlu0 %v138
  %v140 = vpop.xlane.xlu0 %139
  %v141 = vsel %vm89, %v81, 0.0
  %142 = vadd.xlane.f32.xlu0 %v141
  %v143 = vpop.xlane.xlu0 %142
  %v144 = vsel %vm89, %v82, 0.0
  %145 = vadd.xlane.f32.xlu0 %v144
  %v146 = vpop.xlane.xlu0 %145
  %v147 = vsel %vm89, %v83, 0.0
  %148 = vadd.xlane.f32.xlu0 %v147
  %v149 = vpop.xlane.xlu0 %148
  %v150 = vsel %vm89, %v84, 0.0
  %151 = vadd.xlane.f32.xlu0 %v150
  %v152 = vpop.xlane.xlu0 %151
  %v153 = vsel %vm89, %v85, 0.0
  %154 = vadd.xlane.f32.xlu0 %v153
  %v155 = vpop.xlane.xlu0 %154
  %v156 = vsel %vm89, %v86, 0.0
  %157 = vadd.xlane.f32.xlu0 %v156
  %v158 = vpop.xlane.xlu0 %157
  %v159 = vsel %vm89, %v87, 0.0
  %160 = vadd.xlane.f32.xlu0 %v159
  %v161 = vpop.xlane.xlu0 %160
  %v162 = vsel %vm89, %v88, 0.0
  %163 = vadd.xlane.f32.xlu0 %v162
  %v164 = vpop.xlane.xlu0 %163
  %v165 = vrcp.pop 24.0
  %v166 = vmul.f32 %v92, %v165
  %v167 = vmul.f32 %v95, %v165
  %v168 = vmul.f32 %v98, %v165
  %v169 = vmul.f32 %v101, %v165
  %v170 = vmul.f32 %v104, %v165
  %v171 = vmul.f32 %v107, %v165
  %v172 = vmul.f32 %v110, %v165
  %v173 = vmul.f32 %v113, %v165
  %v174 = vmul.f32 %v116, %v165
  %v175 = vmul.f32 %v119, %v165
  %v176 = vmul.f32 %v122, %v165
  %v177 = vmul.f32 %v125, %v165
  %v178 = vmul.f32 %v128, %v165
  %v179 = vmul.f32 %v131, %v165
  %v180 = vmul.f32 %v134, %v165
  %v181 = vmul.f32 %v137, %v165
  %v182 = vmul.f32 %v140, %v165
  %v183 = vmul.f32 %v143, %v165
  %v184 = vmul.f32 %v146, %v165
  %v185 = vmul.f32 %v149, %v165
  %v186 = vmul.f32 %v152, %v165
  %v187 = vmul.f32 %v155, %v165
  %v188 = vmul.f32 %v158, %v165
  %v189 = vmul.f32 %v161, %v165
  %v190 = vmul.f32 %v164, %v165
  %v191 = vsub.f32 %v64, %v166
  %v192 = vsub.f32 %v65, %v167
  %v193 = vsub.f32 %v66, %v168
  %v194 = vsub.f32 %v67, %v169
  %v195 = vsub.f32 %v68, %v170
  %v196 = vsub.f32 %v69, %v171
  %v197 = vsub.f32 %v70, %v172
  %v198 = vsub.f32 %v71, %v173
  %v199 = vsub.f32 %v72, %v174
  %v200 = vsub.f32 %v73, %v175
  %v201 = vsub.f32 %v74, %v176
  %v202 = vsub.f32 %v75, %v177
  %v203 = vsub.f32 %v76, %v178
  %v204 = vsub.f32 %v77, %v179
  %v205 = vsub.f32 %v78, %v180
  %v206 = vsub.f32 %v79, %v181
  %v207 = vsub.f32 %v80, %v182
  %v208 = vsub.f32 %v81, %v183
  %v209 = vsub.f32 %v82, %v184
  %v210 = vsub.f32 %v83, %v185
  %v211 = vsub.f32 %v84, %v186
  %v212 = vsub.f32 %v85, %v187
  %v213 = vsub.f32 %v86, %v188
  %v214 = vsub.f32 %v87, %v189
  %v215 = vsub.f32 %v88, %v190
  %v216 = vmul.f32 %v191, %v191
  %v217 = vmul.f32 %v192, %v192
  %v218 = vmul.f32 %v193, %v193
  %v219 = vmul.f32 %v194, %v194
  %v220 = vmul.f32 %v195, %v195
  %v221 = vmul.f32 %v196, %v196
  %v222 = vmul.f32 %v197, %v197
  %v223 = vmul.f32 %v198, %v198
  %v224 = vmul.f32 %v199, %v199
  %v225 = vmul.f32 %v200, %v200
  %v226 = vmul.f32 %v201, %v201
  %v227 = vmul.f32 %v202, %v202
  %v228 = vmul.f32 %v203, %v203
  %v229 = vmul.f32 %v204, %v204
  %v230 = vmul.f32 %v205, %v205
  %v231 = vmul.f32 %v206, %v206
  %v232 = vmul.f32 %v207, %v207
  %v233 = vmul.f32 %v208, %v208
  %v234 = vmul.f32 %v209, %v209
  %v235 = vmul.f32 %v210, %v210
  %v236 = vmul.f32 %v211, %v211
  %v237 = vmul.f32 %v212, %v212
  %v238 = vmul.f32 %v213, %v213
  %v239 = vmul.f32 %v214, %v214
  %v240 = vmul.f32 %v215, %v215
  %v241 = vsel %vm89, %v216, 0.0
  %242 = vadd.xlane.f32.xlu0 %v241
  %v243 = vpop.xlane.xlu0 %242
  %v244 = vsel %vm89, %v217, 0.0
  %245 = vadd.xlane.f32.xlu0 %v244
  %v246 = vpop.xlane.xlu0 %245
  %v247 = vsel %vm89, %v218, 0.0
  %248 = vadd.xlane.f32.xlu0 %v247
  %v249 = vpop.xlane.xlu0 %248
  %v250 = vsel %vm89, %v219, 0.0
  %251 = vadd.xlane.f32.xlu0 %v250
  %v252 = vpop.xlane.xlu0 %251
  %v253 = vsel %vm89, %v220, 0.0
  %254 = vadd.xlane.f32.xlu0 %v253
  %v255 = vpop.xlane.xlu0 %254
  %v256 = vsel %vm89, %v221, 0.0
  %257 = vadd.xlane.f32.xlu0 %v256
  %v258 = vpop.xlane.xlu0 %257
  %v259 = vsel %vm89, %v222, 0.0
  %260 = vadd.xlane.f32.xlu0 %v259
  %v261 = vpop.xlane.xlu0 %260
  %v262 = vsel %vm89, %v223, 0.0
  %263 = vadd.xlane.f32.xlu0 %v262
  %v264 = vpop.xlane.xlu0 %263
  %v265 = vsel %vm89, %v224, 0.0
  %266 = vadd.xlane.f32.xlu0 %v265
  %v267 = vpop.xlane.xlu0 %266
  %v268 = vsel %vm89, %v225, 0.0
  %269 = vadd.xlane.f32.xlu0 %v268
  %v270 = vpop.xlane.xlu0 %269
  %v271 = vsel %vm89, %v226, 0.0
  %272 = vadd.xlane.f32.xlu0 %v271
  %v273 = vpop.xlane.xlu0 %272
  %v274 = vsel %vm89, %v227, 0.0
  %275 = vadd.xlane.f32.xlu0 %v274
  %v276 = vpop.xlane.xlu0 %275
  %v277 = vsel %vm89, %v228, 0.0
  %278 = vadd.xlane.f32.xlu0 %v277
  %v279 = vpop.xlane.xlu0 %278
  %v280 = vsel %vm89, %v229, 0.0
  %281 = vadd.xlane.f32.xlu0 %v280
  %v282 = vpop.xlane.xlu0 %281
  %v283 = vsel %vm89, %v230, 0.0
  %284 = vadd.xlane.f32.xlu0 %v283
  %v285 = vpop.xlane.xlu0 %284
  %v286 = vsel %vm89, %v231, 0.0
  %287 = vadd.xlane.f32.xlu0 %v286
  %v288 = vpop.xlane.xlu0 %287
  %v289 = vsel %vm89, %v232, 0.0
  %290 = vadd.xlane.f32.xlu0 %v289
  %v291 = vpop.xlane.xlu0 %290
  %v292 = vsel %vm89, %v233, 0.0
  %293 = vadd.xlane.f32.xlu0 %v292
  %v294 = vpop.xlane.xlu0 %293
  %v295 = vsel %vm89, %v234, 0.0
  %296 = vadd.xlane.f32.xlu0 %v295
  %v297 = vpop.xlane.xlu0 %296
  %v298 = vsel %vm89, %v235, 0.0
  %299 = vadd.xlane.f32.xlu0 %v298
  %v300 = vpop.xlane.xlu0 %299
  %v301 = vsel %vm89, %v236, 0.0
  %302 = vadd.xlane.f32.xlu0 %v301
  %v303 = vpop.xlane.xlu0 %302
  %v304 = vsel %vm89, %v237, 0.0
  %305 = vadd.xlane.f32.xlu0 %v304
  %v306 = vpop.xlane.xlu0 %305
  %v307 = vsel %vm89, %v238, 0.0
  %308 = vadd.xlane.f32.xlu0 %v307
  %v309 = vpop.xlane.xlu0 %308
  %v310 = vsel %vm89, %v239, 0.0
  %311 = vadd.xlane.f32.xlu0 %v310
  %v312 = vpop.xlane.xlu0 %311
  %v313 = vsel %vm89, %v240, 0.0
  %314 = vadd.xlane.f32.xlu0 %v313
  %v315 = vpop.xlane.xlu0 %314
  %v316 = vmul.f32 %v243, %v165
  %v317 = vmul.f32 %v246, %v165
  %v318 = vmul.f32 %v249, %v165
  %v319 = vmul.f32 %v252, %v165
  %v320 = vmul.f32 %v255, %v165
  %v321 = vmul.f32 %v258, %v165
  %v322 = vmul.f32 %v261, %v165
  %v323 = vmul.f32 %v264, %v165
  %v324 = vmul.f32 %v267, %v165
  %v325 = vmul.f32 %v270, %v165
  %v326 = vmul.f32 %v273, %v165
  %v327 = vmul.f32 %v276, %v165
  %v328 = vmul.f32 %v279, %v165
  %v329 = vmul.f32 %v282, %v165
  %v330 = vmul.f32 %v285, %v165
  %v331 = vmul.f32 %v288, %v165
  %v332 = vmul.f32 %v291, %v165
  %v333 = vmul.f32 %v294, %v165
  %v334 = vmul.f32 %v297, %v165
  %v335 = vmul.f32 %v300, %v165
  %v336 = vmul.f32 %v303, %v165
  %v337 = vmul.f32 %v306, %v165
  %v338 = vmul.f32 %v309, %v165
  %v339 = vmul.f32 %v312, %v165
  %v340 = vmul.f32 %v315, %v165
  %v341 = vadd.f32 %v316, 1e-05
  %v342 = vadd.f32 %v317, 1e-05
  %v343 = vadd.f32 %v318, 1e-05
  %v344 = vadd.f32 %v319, 1e-05
  %v345 = vadd.f32 %v320, 1e-05
  %v346 = vadd.f32 %v321, 1e-05
  %v347 = vadd.f32 %v322, 1e-05
  %v348 = vadd.f32 %v323, 1e-05
  %v349 = vadd.f32 %v324, 1e-05
  %v350 = vadd.f32 %v325, 1e-05
  %v351 = vadd.f32 %v326, 1e-05
  %v352 = vadd.f32 %v327, 1e-05
  %v353 = vadd.f32 %v328, 1e-05
  %v354 = vadd.f32 %v329, 1e-05
  %v355 = vadd.f32 %v330, 1e-05
  %v356 = vadd.f32 %v331, 1e-05
  %v357 = vadd.f32 %v332, 1e-05
  %v358 = vadd.f32 %v333, 1e-05
  %v359 = vadd.f32 %v334, 1e-05
  %v360 = vadd.f32 %v335, 1e-05
  %v361 = vadd.f32 %v336, 1e-05
  %v362 = vadd.f32 %v337, 1e-05
  %v363 = vadd.f32 %v338, 1e-05
  %v364 = vadd.f32 %v339, 1e-05
  %v365 = vadd.f32 %v340, 1e-05
  %v366 = vrsqrt.pop %v341
  %v367 = vrsqrt.pop %v342
  %v368 = vrsqrt.pop %v343
  %v369 = vrsqrt.pop %v344
  %v370 = vrsqrt.pop %v345
  %v371 = vrsqrt.pop %v346
  %v372 = vrsqrt.pop %v347
  %v373 = vrsqrt.pop %v348
  %v374 = vrsqrt.pop %v349
  %v375 = vrsqrt.pop %v350
  %v376 = vrsqrt.pop %v351
  %v377 = vrsqrt.pop %v352
  %v378 = vrsqrt.pop %v353
  %v379 = vrsqrt.pop %v354
  %v380 = vrsqrt.pop %v355
  %v381 = vrsqrt.pop %v356
  %v382 = vrsqrt.pop %v357
  %v383 = vrsqrt.pop %v358
  %v384 = vrsqrt.pop %v359
  %v385 = vrsqrt.pop %v360
  %v386 = vrsqrt.pop %v361
  %v387 = vrsqrt.pop %v362
  %v388 = vrsqrt.pop %v363
  %v389 = vrsqrt.pop %v364
  %v390 = vrsqrt.pop %v365
  %v391 = vld [vmem:[%s2] sm:$0x1]
  %v392 = vld [vmem:[%s2 + $0x1] sm:$0x1]
  %v393 = vmul.f32 %v191, %v366
  %v394 = vmul.f32 %v192, %v367
  %v395 = vmul.f32 %v193, %v368
  %v396 = vmul.f32 %v194, %v369
  %v397 = vmul.f32 %v195, %v370
  %v398 = vmul.f32 %v196, %v371
  %v399 = vmul.f32 %v197, %v372
  %v400 = vmul.f32 %v198, %v373
  %v401 = vmul.f32 %v199, %v374
  %v402 = vmul.f32 %v200, %v375
  %v403 = vmul.f32 %v201, %v376
  %v404 = vmul.f32 %v202, %v377
  %v405 = vmul.f32 %v203, %v378
  %v406 = vmul.f32 %v204, %v379
  %v407 = vmul.f32 %v205, %v380
  %v408 = vmul.f32 %v206, %v381
  %v409 = vmul.f32 %v207, %v382
  %v410 = vmul.f32 %v208, %v383
  %v411 = vmul.f32 %v209, %v384
  %v412 = vmul.f32 %v210, %v385
  %v413 = vmul.f32 %v211, %v386
  %v414 = vmul.f32 %v212, %v387
  %v415 = vmul.f32 %v213, %v388
  %v416 = vmul.f32 %v214, %v389
  %v417 = vmul.f32 %v215, %v390
  %v418 = vlaneseq
  %v419 = vshrl.u32 %v418, 7
  %v420 = vsub.s32 0, %v419
  %v421 = vrot.slane %v391, %v420
  %v422 = vmul.f32 %v393, %v421
  %v423 = vmul.f32 %v394, %v421
  %v424 = vmul.f32 %v395, %v421
  %v425 = vmul.f32 %v396, %v421
  %v426 = vmul.f32 %v397, %v421
  %v427 = vmul.f32 %v398, %v421
  %v428 = vmul.f32 %v399, %v421
  %v429 = vmul.f32 %v400, %v421
  %v430 = vmul.f32 %v401, %v421
  %v431 = vmul.f32 %v402, %v421
  %v432 = vmul.f32 %v403, %v421
  %v433 = vmul.f32 %v404, %v421
  %v434 = vmul.f32 %v405, %v421
  %v435 = vmul.f32 %v406, %v421
  %v436 = vmul.f32 %v407, %v421
  %v437 = vmul.f32 %v408, %v421
  %v438 = vmul.f32 %v409, %v421
  %v439 = vmul.f32 %v410, %v421
  %v440 = vmul.f32 %v411, %v421
  %v441 = vmul.f32 %v412, %v421
  %v442 = vmul.f32 %v413, %v421
  %v443 = vmul.f32 %v414, %v421
  %v444 = vmul.f32 %v415, %v421
  %v445 = vmul.f32 %v416, %v421
  %v446 = vmul.f32 %v417, %v421
  %v447 = vlaneseq
  %v448 = vshrl.u32 %v447, 7
  %v449 = vsub.s32 0, %v448
  %v450 = vrot.slane %v392, %v449
  %v451 = vadd.f32 %v422, %v450
  %v452 = vadd.f32 %v423, %v450
  %v453 = vadd.f32 %v424, %v450
  %v454 = vadd.f32 %v425, %v450
  %v455 = vadd.f32 %v426, %v450
  %v456 = vadd.f32 %v427, %v450
  %v457 = vadd.f32 %v428, %v450
  %v458 = vadd.f32 %v429, %v450
  %v459 = vadd.f32 %v430, %v450
  %v460 = vadd.f32 %v431, %v450
  %v461 = vadd.f32 %v432, %v450
  %v462 = vadd.f32 %v433, %v450
  %v463 = vadd.f32 %v434, %v450
  %v464 = vadd.f32 %v435, %v450
  %v465 = vadd.f32 %v436, %v450
  %v466 = vadd.f32 %v437, %v450
  %v467 = vadd.f32 %v438, %v450
  %v468 = vadd.f32 %v439, %v450
  %v469 = vadd.f32 %v440, %v450
  %v470 = vadd.f32 %v441, %v450
  %v471 = vadd.f32 %v442, %v450
  %v472 = vadd.f32 %v443, %v450
  %v473 = vadd.f32 %v444, %v450
  %v474 = vadd.f32 %v445, %v450
  %v475 = vadd.f32 %v446, %v450
  %476 = vst.msk [vmem:[%s3] sm:$0xff] %vm89, %v451
  %477 = vst.msk [vmem:[%s3 + $0x8] sm:$0xff] %vm89, %v452
  %478 = vst.msk [vmem:[%s3 + $0x10] sm:$0xff] %vm89, %v453
  %479 = vst.msk [vmem:[%s3 + $0x18] sm:$0xff] %vm89, %v454
  %480 = vst.msk [vmem:[%s3 + $0x20] sm:$0xff] %vm89, %v455
  %481 = vst.msk [vmem:[%s3 + $0x28] sm:$0xff] %vm89, %v456
  %482 = vst.msk [vmem:[%s3 + $0x30] sm:$0xff] %vm89, %v457
  %483 = vst.msk [vmem:[%s3 + $0x38] sm:$0xff] %vm89, %v458
  %484 = vst.msk [vmem:[%s3 + $0x40] sm:$0xff] %vm89, %v459
  %485 = vst.msk [vmem:[%s3 + $0x48] sm:$0xff] %vm89, %v460
  %486 = vst.msk [vmem:[%s3 + $0x50] sm:$0xff] %vm89, %v461
  %487 = vst.msk [vmem:[%s3 + $0x58] sm:$0xff] %vm89, %v462
  %488 = vst.msk [vmem:[%s3 + $0x60] sm:$0xff] %vm89, %v463
  %489 = vst.msk [vmem:[%s3 + $0x68] sm:$0xff] %vm89, %v464
  %490 = vst.msk [vmem:[%s3 + $0x70] sm:$0xff] %vm89, %v465
  %491 = vst.msk [vmem:[%s3 + $0x78] sm:$0xff] %vm89, %v466
  %492 = vst.msk [vmem:[%s3 + $0x80] sm:$0xff] %vm89, %v467
  %493 = vst.msk [vmem:[%s3 + $0x88] sm:$0xff] %vm89, %v468
  %494 = vst.msk [vmem:[%s3 + $0x90] sm:$0xff] %vm89, %v469
  %495 = vst.msk [vmem:[%s3 + $0x98] sm:$0xff] %vm89, %v470
  %496 = vst.msk [vmem:[%s3 + $0xa0] sm:$0xff] %vm89, %v471
  %497 = vst.msk [vmem:[%s3 + $0xa8] sm:$0xff] %vm89, %v472
  %498 = vst.msk [vmem:[%s3 + $0xb0] sm:$0xff] %vm89, %v473
  %499 = vst.msk [vmem:[%s3 + $0xb8] sm:$0xff] %vm89, %v474
  %500 = vst.msk [vmem:[%s3 + $0xc0] sm:$0xff] %vm89, %v475
  // Predicated region
  $region14: #{tpu_custom_call.1} parent=0 // pred_check
    _
  $region15: #{tpu_custom_call.1} parent=0 // pred_check_branch
    %502 = sbr.rel (0) target = $region17
  $region16: #{tpu_custom_call.1} parent=0 // pred_region
    _
  $region17: #{tpu_custom_call.1} parent=0 // pred_fallthru
    _
  // Predicated region
  $region18: #{tpu_custom_call.1} parent=0 // pred_check
    _
  $region19: #{tpu_custom_call.1} parent=0 // pred_check_branch
    %504 = sbr.rel (0) target = $region21
  $region20: #{tpu_custom_call.1} parent=0 // pred_region
    _
  $region21: #{tpu_custom_call.1} parent=0 // pred_fallthru
    _

</llo_original>
